<compile_context>
chip_gen: v5e
topology: v5e:2x2
jax: 0.10.0
libtpu: 0.0.40
codegen_flags: <defaults>
</compile_context>

<pallas_src>
import functools

import jax
import jax.numpy as jnp
from jax.experimental import pallas as pl
from jax.experimental.pallas import tpu as pltpu


_LANE = 128
_MAX_SPATIAL_TILE = 32768  # lanes; the VMEM budget is the real governor


def _vmem_budget():
    """Generation-aware VMEM policy.

    Returns (vmem_limit_bytes, tile_budget_bytes):
      * vmem_limit_bytes: scoped-VMEM limit handed to Mosaic (~62% of physical
        -> ~40 MiB on v7x's 64 MiB per-TC, ~83 MiB on v5e/v6e's 128 MiB),
        leaving headroom for compiler scratch, resident weights and semaphores.
      * tile_budget_bytes: what tile sizing may spend on double-buffered
        in/out blocks (half the limit).
    """
    phys = 64 * 1024 * 1024  # conservative default = v7x per-TC VMEM
    try:
        phys = int(getattr(pltpu.get_tpu_info(), "vmem_capacity_bytes", phys))
    except Exception:
        pass
    limit = min(int(phys * 0.62), 96 * 1024 * 1024)
    return limit, limit // 2


def _choose_spatial_tile(hw, c, itemsize, tile_budget):
    """Largest lane-dense (multiple-of-128) spatial tile whose double-buffered
    in+out blocks (4 live (C, T) tiles in the apply pass) fit the budget."""
    if hw <= _LANE:
        # TODO(synk): for late-stage SE blocks (H*W < 128, C >= 512) a (B, HW, C)
        # layout with C on the lane axis would avoid masked partial stores, but
        # producing it from NCHW needs a full XLA transpose (an extra read+write
        # of x) which outweighs the store-path win; leave layout to the caller.
        return hw
    max_by_vmem = tile_budget // (4 * c * itemsize)
    max_by_vmem = max(_LANE, (max_by_vmem // _LANE) * _LANE)
    t = min(_MAX_SPATIAL_TILE, max_by_vmem, int(pl.cdiv(hw, _LANE)) * _LANE)
    return max(_LANE, int(t))


# ----------------------------------------------------------------------------
# Fused single-pass kernel: pool -> excite -> apply on one resident batch row.
# ----------------------------------------------------------------------------
def _se_fused_kernel(x_ref, w1_ref, b1_ref, w2_ref, b2_ref, o_ref, *, hw):
    # x_ref/o_ref: (1, C, HW)   w1: (C, hid)  b1: (1, hid)  w2: (hid, C)  b2: (1, C)
    c = x_ref.shape[1]
    x = x_ref[...]                                                   # input dtype
    pooled = jnp.sum(x, axis=-1, dtype=jnp.float32) * (1.0 / hw)     # (1, C) f32
    h = jnp.dot(pooled, w1_ref[...], preferred_element_type=jnp.float32)
    h = jnp.maximum(h + b1_ref[...], 0.0)                            # ReLU (active_fn)
    g = jnp.dot(h, w2_ref[...], preferred_element_type=jnp.float32)
    gate = jax.nn.sigmoid(g + b2_ref[...])                           # (1, C) f32
    # Multiply in the input dtype (bf16-native VPU on v6e/v7x); exact for f32.
    gate = gate.astype(x.dtype).reshape(1, c, 1)
    o_ref[...] = (x * gate).astype(o_ref.dtype)


# ----------------------------------------------------------------------------
# Two-pass fallback kernels (rows too large to keep resident in VMEM).
# ----------------------------------------------------------------------------
def _se_pool_kernel(x_ref, sum_ref, *, hw, tile):
    # x_ref: (1, C, tile)   sum_ref: (1, C, 1) f32 resident accumulator.
    t = pl.program_id(1)

    @pl.when(t == 0)
    def _init():
        sum_ref[...] = jnp.zeros_like(sum_ref)

    if hw % tile == 0:
        sum_ref[...] += jnp.sum(x_ref[...], axis=-1, keepdims=True,
                                dtype=jnp.float32)
    else:
        # Only the last spatial tile can run past HW: gate the (cheap, (1,1,T))
        # lane mask under pl.when so interior tiles stay pure DMA + XLU reduce.
        last = pl.num_programs(1) - 1

        @pl.when(t != last)
        def _interior():
            sum_ref[...] += jnp.sum(x_ref[...], axis=-1, keepdims=True,
                                    dtype=jnp.float32)

        @pl.when(t == last)
        def _tail():
            lane = jax.lax.broadcasted_iota(jnp.int32, (1, 1, tile), 2)
            x = jnp.where(lane < hw - t * tile, x_ref[...],
                          jnp.zeros((), x_ref.dtype))
            sum_ref[...] += jnp.sum(x, axis=-1, keepdims=True, dtype=jnp.float32)


def _se_excite_kernel(sum_ref, w1_ref, b1_ref, w2_ref, b2_ref, gate_ref, *, hw):
    # Whole-batch excitation: (B,C) x (C,hid) x (hid,C) in one shot — better MXU
    # utilization than one M=1 matmul per batch row inside the pool pipeline.
    b, c = sum_ref.shape[0], sum_ref.shape[1]
    pooled = sum_ref[...].reshape(b, c) * (1.0 / hw)                 # (B, C) f32 mean
    h = jnp.dot(pooled, w1_ref[...], preferred_element_type=jnp.float32)
    h = jnp.maximum(h + b1_ref[...], 0.0)
    g = jnp.dot(h, w2_ref[...], preferred_element_type=jnp.float32) + b2_ref[...]
    gate_ref[...] = jax.nn.sigmoid(g).reshape(b, c, 1).astype(gate_ref.dtype)


def _se_apply_kernel(x_ref, gate_ref, o_ref):
    # Gate is already in x.dtype -> multiply stays in the input dtype.
    o_ref[...] = (x_ref[...] * gate_ref[...]).astype(o_ref.dtype)


# ----------------------------------------------------------------------------
# Wrapper
# ----------------------------------------------------------------------------
def squeeze_and_excitation(x, w_reduce, b_reduce, w_expand, b_expand,
                           *, spatial_tile=None, force_two_pass=False):
    """x: (B, C, H, W) NCHW.  w_reduce: (hid, C, 1, 1), w_expand: (C, hid, 1, 1)."""
    B, C, H, W = x.shape
    hid = w_reduce.shape[0]
    HW = H * W
    itemsize = jnp.dtype(x.dtype).itemsize

    x3 = x.reshape(B, C, HW)
    w1 = jnp.transpose(w_reduce.reshape(hid, C))    # (C, hid)
    b1 = b_reduce.reshape(1, hid)
    w2 = jnp.transpose(w_expand.reshape(C, hid))    # (hid, C)
    b2 = b_expand.reshape(1, C)

    vmem_limit, tile_budget = _vmem_budget()
    x_bytes = B * C * HW * itemsize
    w_bytes = (C * hid + hid + hid * C + C) * 4

    # ------------------------------------------------------------------
    # Fast path: fully fused pool + excite + apply, one resident row per step.
    # ------------------------------------------------------------------
    fused_row_bytes = 4 * C * HW * itemsize + w_bytes  # in+out, double-buffered
    if not force_two_pass and fused_row_bytes <= tile_budget:
        out = pl.pallas_call(
            functools.partial(_se_fused_kernel, hw=HW),
            out_shape=jax.ShapeDtypeStruct((B, C, HW), x.dtype),
            grid_spec=pltpu.PrefetchScalarGridSpec(
                num_scalar_prefetch=0,
                grid=(B,),
                in_specs=[
                    pl.BlockSpec((1, C, HW), lambda b: (b, 0, 0)),   # x row
                    pl.BlockSpec((C, hid), lambda b: (0, 0)),        # w1 (resident)
                    pl.BlockSpec((1, hid), lambda b: (0, 0)),        # b1
                    pl.BlockSpec((hid, C), lambda b: (0, 0)),        # w2
                    pl.BlockSpec((1, C), lambda b: (0, 0)),          # b2
                ],
                out_specs=pl.BlockSpec((1, C, HW), lambda b: (b, 0, 0)),
            ),
            compiler_params=pltpu.CompilerParams(
                # TODO(synk): with B == 1 on v7x this leaves one TensorCore idle;
                # splitting each row across the two cores (partial sums combined
                # before the excite) would recover the pool/apply bandwidth.
                dimension_semantics=("parallel",),
                vmem_limit_bytes=vmem_limit,
            ),
            cost_estimate=pl.CostEstimate(
                flops=2 * B * C * HW + 4 * B * C * hid,
                transcendentals=B * C,
                bytes_accessed=2 * x_bytes + w_bytes,
            ),
        )(x3, w1, b1, w2, b2)
        return out.reshape(B, C, H, W)

    # ------------------------------------------------------------------
    # Fallback: two streaming passes over x.
    # ------------------------------------------------------------------
    T = int(spatial_tile) if spatial_tile is not None else \
        _choose_spatial_tile(HW, C, itemsize, tile_budget)
    n_tiles = int(pl.cdiv(HW, T))

    # Pass 1: spatial partial sums -> (B, C, 1) f32.
    sums = pl.pallas_call(
        functools.partial(_se_pool_kernel, hw=HW, tile=T),
        out_shape=jax.ShapeDtypeStruct((B, C, 1), jnp.float32),
        grid_spec=pltpu.PrefetchScalarGridSpec(
            num_scalar_prefetch=0,
            grid=(B, n_tiles),
            in_specs=[pl.BlockSpec((1, C, T), lambda b, t: (b, 0, t))],
            out_specs=pl.BlockSpec((1, C, 1), lambda b, t: (b, 0, 0)),
        ),
        compiler_params=pltpu.CompilerParams(
            dimension_semantics=("parallel", "arbitrary"),
            vmem_limit_bytes=vmem_limit,
        ),
        cost_estimate=pl.CostEstimate(
            flops=B * C * HW, transcendentals=0,
            bytes_accessed=x_bytes + B * C * 4),
    )(x3)

    # Excite (whole batch, tiny): two 1x1 convs + ReLU + sigmoid -> gate in x.dtype.
    gate = pl.pallas_call(
        functools.partial(_se_excite_kernel, hw=HW),
        out_shape=jax.ShapeDtypeStruct((B, C, 1), x.dtype),
    )(sums, w1, b1, w2, b2)

    # Pass 2: out = x * gate (gate resident per batch row).
    out = pl.pallas_call(
        _se_apply_kernel,
        out_shape=jax.ShapeDtypeStruct((B, C, HW), x.dtype),
        grid_spec=pltpu.PrefetchScalarGridSpec(
            num_scalar_prefetch=0,
            grid=(B, n_tiles),
            in_specs=[
                pl.BlockSpec((1, C, T), lambda b, t: (b, 0, t)),   # x tile
                pl.BlockSpec((1, C, 1), lambda b, t: (b, 0, 0)),   # gate
            ],
            out_specs=pl.BlockSpec((1, C, T), lambda b, t: (b, 0, t)),
        ),
        compiler_params=pltpu.CompilerParams(
            dimension_semantics=("parallel", "parallel"),
            vmem_limit_bytes=vmem_limit,
        ),
        cost_estimate=pl.CostEstimate(
            flops=B * C * HW, transcendentals=0,
            bytes_accessed=2 * x_bytes + B * C * itemsize),
    )(x3, gate)

    return out.reshape(B, C, H, W)


def _reference(x, w_reduce, b_reduce, w_expand, b_expand):
    """Pure-JAX reference mirroring the PyTorch forward (active_fn = ReLU)."""
    B, C, H, W = x.shape
    hid = w_reduce.shape[0]
    pooled = jnp.mean(x, axis=(2, 3))                               # (B, C)
    h = pooled @ w_reduce.reshape(hid, C).T + b_reduce              # (B, hid)
    h = jnp.maximum(h, 0.0)
    g = h @ w_expand.reshape(C, hid).T + b_expand                   # (B, C)
    gate = jax.nn.sigmoid(g)
    return gate[:, :, None, None] * x


if __name__ == "__main__":
    B, C = 2, 4
    n_hidden = 32

    key = jax.random.PRNGKey(0)
    kx, kw1, kb1, kw2, kb2, kx2 = jax.random.split(key, 6)
    # nn.Conv2d(n_feature, n_hidden, 1, bias=True): weight (n_hidden, n_feature, 1, 1)
    w_reduce = jax.random.normal(kw1, (n_hidden, C, 1, 1), dtype=jnp.float32) * 0.1
    b_reduce = jax.random.normal(kb1, (n_hidden,), dtype=jnp.float32) * 0.1
    # nn.Conv2d(n_hidden, n_feature, 1, bias=True): weight (n_feature, n_hidden, 1, 1)
    w_expand = jax.random.normal(kw2, (C, n_hidden, 1, 1), dtype=jnp.float32) * 0.1
    b_expand = jax.random.normal(kb2, (C,), dtype=jnp.float32) * 0.1

    # Case 1: fused single-pass path (row fits VMEM), H*W = 256.
    x = jax.random.normal(kx, (B, C, 16, 16), dtype=jnp.float32)
    ref = _reference(x, w_reduce, b_reduce, w_expand, b_expand)
    out = jax.block_until_ready(
        squeeze_and_excitation(x, w_reduce, b_reduce, w_expand, b_expand))
    assert out.shape == x.shape
    assert jnp.allclose(out, ref, atol=1e-5, rtol=1e-5), "mismatch (fused)"

    # Case 2: forced two-pass fallback, spatial_tile=128 -> 2 even tiles
    # (exercises the resident accumulator, whole-batch excite, apply pass).
    out2 = jax.block_until_ready(
        squeeze_and_excitation(x, w_reduce, b_reduce, w_expand, b_expand,
                               force_two_pass=True, spatial_tile=128))
    assert jnp.allclose(out2, ref, atol=1e-5, rtol=1e-5), "mismatch (two-pass)"

    # Case 3: H*W = 144 (not a multiple of 128), forced two-pass -> exercises the
    # last-tile-only ragged mask in the pool pass and boundary clipping in apply.
    x3 = jax.random.normal(kx2, (B, C, 12, 12), dtype=jnp.float32)
    ref3 = _reference(x3, w_reduce, b_reduce, w_expand, b_expand)
    out3 = jax.block_until_ready(
        squeeze_and_excitation(x3, w_reduce, b_reduce, w_expand, b_expand,
                               force_two_pass=True, spatial_tile=128))
    assert jnp.allclose(out3, ref3, atol=1e-5, rtol=1e-5), "mismatch (ragged two-pass)"

    # Case 4: fused path with ragged H*W (full-row block, no masking needed).
    out4 = jax.block_until_ready(
        squeeze_and_excitation(x3, w_reduce, b_reduce, w_expand, b_expand))
    assert jnp.allclose(out4, ref3, atol=1e-5, rtol=1e-5), "mismatch (fused ragged)"

    # Case 5: bf16 input -> gate computed in f32, cast + applied in bf16.
    xb = x.astype(jnp.bfloat16)
    refb = _reference(xb.astype(jnp.float32), w_reduce, b_reduce, w_expand, b_expand)
    outb = jax.block_until_ready(
        squeeze_and_excitation(xb, w_reduce, b_reduce, w_expand, b_expand))
    assert outb.dtype == jnp.bfloat16
    assert jnp.allclose(outb.astype(jnp.float32), refb, atol=5e-2, rtol=5e-2), \
        "mismatch (bf16)"

    print("KERNEL_OK")
</pallas_src>

<mosaic_0001>
module attributes {stable_mosaic.version = 11 : i64} {
  func.func @_se_fused_kernel(%arg0: i32, %arg1: memref<1x4x256xf32, #tpu.memory_space<vmem>>, %arg2: memref<4x32xf32, #tpu.memory_space<vmem>>, %arg3: memref<1x32xf32, #tpu.memory_space<vmem>>, %arg4: memref<32x4xf32, #tpu.memory_space<vmem>>, %arg5: memref<1x4xf32, #tpu.memory_space<vmem>>, %arg6: memref<1x4x256xf32, #tpu.memory_space<vmem>>) attributes {dimension_semantics = [#tpu.dimension_semantics<parallel>], iteration_bounds = array<i64: 2>, scalar_prefetch = 0 : i64, scratch_operands = 0 : i64, tpu.core_type = #tpu.core_type<tc>, window_params = [{transform_indices = @transform_0, window_bounds = array<i64: 1, 4, 256>}, {pipeline_mode = #tpu.pipeline_mode<synchronous>, transform_indices = @transform_1, window_bounds = array<i64: 4, 32>}, {pipeline_mode = #tpu.pipeline_mode<synchronous>, transform_indices = @transform_2, window_bounds = array<i64: 1, 32>}, {pipeline_mode = #tpu.pipeline_mode<synchronous>, transform_indices = @transform_3, window_bounds = array<i64: 32, 4>}, {pipeline_mode = #tpu.pipeline_mode<synchronous>, transform_indices = @transform_4, window_bounds = array<i64: 1, 4>}, {transform_indices = @transform_5, window_bounds = array<i64: 1, 4, 256>}]} {
    %c0 = arith.constant 0 : index
    %c0_0 = arith.constant 0 : index
    %c0_1 = arith.constant 0 : index
    %0 = vector.load %arg1[%c0, %c0_0, %c0_1] : memref<1x4x256xf32, #tpu.memory_space<vmem>>, vector<1x4x256xf32>
    %cst = arith.constant dense<0.000000e+00> : vector<1x4xf32>
    %1 = vector.multi_reduction <add>, %0, %cst [2] : vector<1x4x256xf32> to vector<1x4xf32>
    %cst_2 = arith.constant 3.906250e-03 : f32
    %2 = vector.broadcast %cst_2 : f32 to vector<1x4xf32>
    %3 = arith.mulf %1, %2 : vector<1x4xf32>
    %c0_3 = arith.constant 0 : index
    %c0_4 = arith.constant 0 : index
    %4 = vector.load %arg2[%c0_3, %c0_4] : memref<4x32xf32, #tpu.memory_space<vmem>>, vector<4x32xf32>
    %cst_5 = arith.constant dense<0.000000e+00> : vector<1x32xf32>
    %5 = tpu.matmul %3, %4, %cst_5 {dimension_numbers = #tpu.dot_dimension_numbers<[1], [0], [0], [1], [0, 0, 1, 1], [], []>} : vector<1x4xf32>, vector<4x32xf32>, vector<1x32xf32> -> vector<1x32xf32>
    %c0_6 = arith.constant 0 : index
    %c0_7 = arith.constant 0 : index
    %6 = vector.load %arg3[%c0_6, %c0_7] : memref<1x32xf32, #tpu.memory_space<vmem>>, vector<1x32xf32>
    %7 = arith.addf %5, %6 : vector<1x32xf32>
    %cst_8 = arith.constant 0.000000e+00 : f32
    %8 = vector.broadcast %cst_8 : f32 to vector<1x32xf32>
    %9 = arith.maximumf %7, %8 : vector<1x32xf32>
    %c0_9 = arith.constant 0 : index
    %c0_10 = arith.constant 0 : index
    %10 = vector.load %arg4[%c0_9, %c0_10] : memref<32x4xf32, #tpu.memory_space<vmem>>, vector<32x4xf32>
    %cst_11 = arith.constant dense<0.000000e+00> : vector<1x4xf32>
    %11 = tpu.matmul %9, %10, %cst_11 {dimension_numbers = #tpu.dot_dimension_numbers<[1], [0], [0], [1], [0, 0, 1, 1], [], []>} : vector<1x32xf32>, vector<32x4xf32>, vector<1x4xf32> -> vector<1x4xf32>
    %c0_12 = arith.constant 0 : index
    %c0_13 = arith.constant 0 : index
    %12 = vector.load %arg5[%c0_12, %c0_13] : memref<1x4xf32, #tpu.memory_space<vmem>>, vector<1x4xf32>
    %13 = arith.addf %11, %12 : vector<1x4xf32>
    %14 = arith.negf %13 : vector<1x4xf32>
    %15 = math.exp %14 : vector<1x4xf32>
    %cst_14 = arith.constant 1.000000e+00 : f32
    %16 = vector.broadcast %cst_14 : f32 to vector<1x4xf32>
    %17 = arith.addf %16, %15 : vector<1x4xf32>
    %18 = arith.divf %16, %17 : vector<1x4xf32>
    %19 = vector.shape_cast %18 : vector<1x4xf32> to vector<1x4x1xf32>
    %20 = vector.broadcast %19 : vector<1x4x1xf32> to vector<1x4x256xf32>
    %21 = arith.mulf %0, %20 : vector<1x4x256xf32>
    %c0_15 = arith.constant 0 : index
    %c0_16 = arith.constant 0 : index
    %c0_17 = arith.constant 0 : index
    %22 = vector.load %arg6[%c0_15, %c0_16, %c0_17] : memref<1x4x256xf32, #tpu.memory_space<vmem>>, vector<1x4x256xf32>
    tpu.vector_store %arg6[%c0_15, %c0_16, %c0_17], %21 {strides = array<i32>} : memref<1x4x256xf32, #tpu.memory_space<vmem>>, vector<1x4x256xf32>,
    return
  }
  func.func @transform_0(%arg0: i32) -> (i32, i32, i32) {
    %c0_i32 = arith.constant 0 : i32
    %c0_i32_0 = arith.constant 0 : i32
    %c0_i32_1 = arith.constant 0 : i32
    return %arg0, %c0_i32, %c0_i32_0 : i32, i32, i32
  }
  func.func @transform_1(%arg0: i32) -> (i32, i32) {
    %c0_i32 = arith.constant 0 : i32
    %c0_i32_0 = arith.constant 0 : i32
    %c0_i32_1 = arith.constant 0 : i32
    return %c0_i32, %c0_i32_0 : i32, i32
  }
  func.func @transform_2(%arg0: i32) -> (i32, i32) {
    %c0_i32 = arith.constant 0 : i32
    %c0_i32_0 = arith.constant 0 : i32
    %c0_i32_1 = arith.constant 0 : i32
    return %c0_i32, %c0_i32_0 : i32, i32
  }
  func.func @transform_3(%arg0: i32) -> (i32, i32) {
    %c0_i32 = arith.constant 0 : i32
    %c0_i32_0 = arith.constant 0 : i32
    %c0_i32_1 = arith.constant 0 : i32
    return %c0_i32, %c0_i32_0 : i32, i32
  }
  func.func @transform_4(%arg0: i32) -> (i32, i32) {
    %c0_i32 = arith.constant 0 : i32
    %c0_i32_0 = arith.constant 0 : i32
    %c0_i32_1 = arith.constant 0 : i32
    return %c0_i32, %c0_i32_0 : i32, i32
  }
  func.func @transform_5(%arg0: i32) -> (i32, i32, i32) {
    %c0_i32 = arith.constant 0 : i32
    %c0_i32_0 = arith.constant 0 : i32
    %c0_i32_1 = arith.constant 0 : i32
    return %arg0, %c0_i32, %c0_i32_0 : i32, i32, i32
  }
}

</mosaic_0001>

<llo_original>
// kernel: tpu_custom_call.1
$region0: #{tpu_custom_call.1}
  #allocation0 [shape = 'u32[]', space=smem, size = 0x4, offset = 0x4, fixed_abs, tag = 'smem constant byte address 0x4 - core index']
  #allocation1 [shape = 'u32[72,128]{1,0:T(1,128)}', space=vmem, size = 0x9000, scoped, tag = 'internal scratch']
  %s0 = inlined_call_operand.vmem [shape: f32[2,4,256], index: 0, kind: input, shape index: {}]
  %s1 = inlined_call_operand.vmem [shape: f32[4,32], index: 1, kind: input, shape index: {}]
  %s2 = inlined_call_operand.vmem [shape: f32[1,32], index: 2, kind: input, shape index: {}]
  %s3 = inlined_call_operand.vmem [shape: f32[32,4], index: 3, kind: input, shape index: {}]
  %s4 = inlined_call_operand.vmem [shape: f32[1,4], index: 4, kind: input, shape index: {}]
  %s5 = inlined_call_operand.hbm [shape: f32[2,4,256], index: 5, kind: output, shape index: {}]
  %s6 = sld [smem:[#allocation0]]
  $region53: #{tpu_custom_call.1} parent=0
    _
  %s8 = ssub.s32 1, %s6
  %s9 = scalar_select 0, %s8, %s6
  $region1: #{tpu_custom_call.1} parent=0
    #allocation2 [shape = 'u8[8192]{0}', space=vmem, size = 0x2000, scoped, tag = 'output window, operand 0']
    #allocation3 [shape = 's32[2]{0}', space=sflag, size = 0x8, scoped, tag = 'scoped memory for tpu_custom_call.1']
    %10 = vsyncpa [#allocation3], 0
    %s11 = scalar_lea.sflag [#allocation3], 1
    %12 = vsyncpa %s11, 0
    loop: start=0, step=1, limit=4
    $region2: #{tpu_custom_call.1} parent=1 // loop_pre_header
      _
    $region3: #{tpu_custom_call.1} parent=1 // loop_header
      %s14 = sphi 0, %s18
      %p15 = scmp.ge.s32.totalorder %s14, 4
      %s24 = sphi 0, %s26
      %s27 = sphi 0, %s24
      %s28 = sphi 0, %s27
      %s44 = sphi 0, %s28
      %s48 = sphi 0, %s48
      %s50 = sphi 0, %s48
      %s51 = sphi 0, %s50
      %s65 = sphi 0, %s51
      %s69 = sphi 0, %s69
      %s71 = sphi 0, %s69
      %s72 = sphi 0, %s71
      %s86 = sphi 0, %s72
      %s90 = sphi 0, %s90
      %s92 = sphi 0, %s90
      %s93 = sphi 0, %s92
      %s107 = sphi 0, %s93
      %s111 = sphi 0, %s111
      %s113 = sphi 0, %s111
      %s114 = sphi 0, %s113
      %s128 = sphi 0, %s114
      %s134 = sphi 0, %s136
      %s137 = sphi 0, %s134
      %s138 = sphi 0, %s137
      %s154 = sphi 0, %s138
    $region4: #{tpu_custom_call.1} parent=1 // loop_header_branch
      %17 = sbr.rel (%p15) target = $region8
    $region5: #{tpu_custom_call.1} parent=1 // loop_body
      %s19 = ssub.s32 %s14, 1
      %s20 = ssub.s32 %s14, 2
      %s21 = sadd.s32 %s14, 1
      %s22 = ssub.s32 %s14, %s21
      %p23 = scmp.eq.s32.totalorder %s22, 0
      %s25 = sadd.s32 %s24, 1
      %s26 = scalar_select %p23, %s24, %s25
      %p29 = pneg %p23
      %p30 = scmp.eq.s32.totalorder %s14, 1
      %p31 = por %p29, %p30
      %p32 = scmp.ne.s32.totalorder %s24, %s27
      %p33 = scmp.eq.s32.totalorder %s14, 0
      %p34 = por %p32, %p33
      %p35 = scmp.ne.s32.totalorder %s24, %s27
      %p36 = scmp.eq.s32.totalorder %s19, 1
      %p37 = por %p35, %p36
      %p38 = scmp.ne.s32.totalorder %s27, %s28
      %p39 = scmp.eq.s32.totalorder %s19, 0
      %p40 = por %p38, %p39
      %p41 = scmp.ne.s32.totalorder %s27, %s28
      %p42 = scmp.eq.s32.totalorder %s20, 1
      %p43 = por %p41, %p42
      %p45 = scmp.ne.s32.totalorder %s28, %s44
      %p46 = scmp.eq.s32.totalorder %s20, 0
      %p47 = por %p45, %p46
      %s49 = sadd.s32 %s48, 1
      %p52 = scmp.eq.s32.totalorder %s14, 1
      %p53 = scmp.ne.s32.totalorder %s48, %s50
      %p54 = scmp.eq.s32.totalorder %s14, 0
      %p55 = por %p53, %p54
      %p56 = scmp.ne.s32.totalorder %s48, %s50
      %p57 = scmp.eq.s32.totalorder %s19, 1
      %p58 = por %p56, %p57
      %p59 = scmp.ne.s32.totalorder %s50, %s51
      %p60 = scmp.eq.s32.totalorder %s19, 0
      %p61 = por %p59, %p60
      %p62 = scmp.ne.s32.totalorder %s50, %s51
      %p63 = scmp.eq.s32.totalorder %s20, 1
      %p64 = por %p62, %p63
      %p66 = scmp.ne.s32.totalorder %s51, %s65
      %p67 = scmp.eq.s32.totalorder %s20, 0
      %p68 = por %p66, %p67
      %s70 = sadd.s32 %s69, 1
      %p73 = scmp.eq.s32.totalorder %s14, 1
      %p74 = scmp.ne.s32.totalorder %s69, %s71
      %p75 = scmp.eq.s32.totalorder %s14, 0
      %p76 = por %p74, %p75
      %p77 = scmp.ne.s32.totalorder %s69, %s71
      %p78 = scmp.eq.s32.totalorder %s19, 1
      %p79 = por %p77, %p78
      %p80 = scmp.ne.s32.totalorder %s71, %s72
      %p81 = scmp.eq.s32.totalorder %s19, 0
      %p82 = por %p80, %p81
      %p83 = scmp.ne.s32.totalorder %s71, %s72
      %p84 = scmp.eq.s32.totalorder %s20, 1
      %p85 = por %p83, %p84
      %p87 = scmp.ne.s32.totalorder %s72, %s86
      %p88 = scmp.eq.s32.totalorder %s20, 0
      %p89 = por %p87, %p88
      %s91 = sadd.s32 %s90, 1
      %p94 = scmp.eq.s32.totalorder %s14, 1
      %p95 = scmp.ne.s32.totalorder %s90, %s92
      %p96 = scmp.eq.s32.totalorder %s14, 0
      %p97 = por %p95, %p96
      %p98 = scmp.ne.s32.totalorder %s90, %s92
      %p99 = scmp.eq.s32.totalorder %s19, 1
      %p100 = por %p98, %p99
      %p101 = scmp.ne.s32.totalorder %s92, %s93
      %p102 = scmp.eq.s32.totalorder %s19, 0
      %p103 = por %p101, %p102
      %p104 = scmp.ne.s32.totalorder %s92, %s93
      %p105 = scmp.eq.s32.totalorder %s20, 1
      %p106 = por %p104, %p105
      %p108 = scmp.ne.s32.totalorder %s93, %s107
      %p109 = scmp.eq.s32.totalorder %s20, 0
      %p110 = por %p108, %p109
      %s112 = sadd.s32 %s111, 1
      %p115 = scmp.eq.s32.totalorder %s14, 1
      %p116 = scmp.ne.s32.totalorder %s111, %s113
      %p117 = scmp.eq.s32.totalorder %s14, 0
      %p118 = por %p116, %p117
      %p119 = scmp.ne.s32.totalorder %s111, %s113
      %p120 = scmp.eq.s32.totalorder %s19, 1
      %p121 = por %p119, %p120
      %p122 = scmp.ne.s32.totalorder %s113, %s114
      %p123 = scmp.eq.s32.totalorder %s19, 0
      %p124 = por %p122, %p123
      %p125 = scmp.ne.s32.totalorder %s113, %s114
      %p126 = scmp.eq.s32.totalorder %s20, 1
      %p127 = por %p125, %p126
      %p129 = scmp.ne.s32.totalorder %s114, %s128
      %p130 = scmp.eq.s32.totalorder %s20, 0
      %p131 = por %p129, %p130
      %s132 = ssub.s32 %s14, %s21
      %p133 = scmp.eq.s32.totalorder %s132, 0
      %s135 = sadd.s32 %s134, 1
      %s136 = scalar_select %p133, %s134, %s135
      %p139 = pneg %p133
      %p140 = scmp.eq.s32.totalorder %s14, 1
      %p141 = por %p139, %p140
      %p142 = scmp.ne.s32.totalorder %s134, %s137
      %p143 = scmp.eq.s32.totalorder %s14, 0
      %p144 = por %p142, %p143
      %p145 = scmp.ne.s32.totalorder %s134, %s137
      %p146 = scmp.eq.s32.totalorder %s19, 1
      %p147 = por %p145, %p146
      %p148 = scmp.ne.s32.totalorder %s137, %s138
      %p149 = scmp.eq.s32.totalorder %s19, 0
      %p150 = por %p148, %p149
      %p151 = scmp.ne.s32.totalorder %s137, %s138
      %p152 = scmp.eq.s32.totalorder %s20, 1
      %p153 = por %p151, %p152
      %p155 = scmp.ne.s32.totalorder %s138, %s154
      %p156 = scmp.eq.s32.totalorder %s20, 0
      %p157 = por %p155, %p156
      %p158 = scmp.le.s32.totalorder 1, %s14
      %p159 = scmp.lt.s32.totalorder %s14, 3
      %p160 = pnand %p158, %p159
      %p161 = pneg %p160
      // Predicated region
      $region9: #{tpu_custom_call.1} parent=5 // pred_check
        _
      $region10: #{tpu_custom_call.1} parent=5 // pred_check_branch
        %163 = sbr.rel (%p160) target = $region12
      $region11: #{tpu_custom_call.1} parent=5 // pred_region
        %s164 = ssub.s32 %s14, 1
        // Predicated region
        $region13: #{tpu_custom_call.1} parent=11 // pred_check
          %p165 = pneg %p61
        $region14: #{tpu_custom_call.1} parent=11 // pred_check_branch
          %167 = sbr.rel (%p165) target = $region16
        $region15: #{tpu_custom_call.1} parent=11 // pred_region
          _
        $region16: #{tpu_custom_call.1} parent=11 // pred_fallthru
          _
        // Predicated region
        $region17: #{tpu_custom_call.1} parent=11 // pred_check
          %p168 = pneg %p82
        $region18: #{tpu_custom_call.1} parent=11 // pred_check_branch
          %170 = sbr.rel (%p168) target = $region20
        $region19: #{tpu_custom_call.1} parent=11 // pred_region
          _
        $region20: #{tpu_custom_call.1} parent=11 // pred_fallthru
          _
        // Predicated region
        $region21: #{tpu_custom_call.1} parent=11 // pred_check
          %p171 = pneg %p103
        $region22: #{tpu_custom_call.1} parent=11 // pred_check_branch
          %173 = sbr.rel (%p171) target = $region24
        $region23: #{tpu_custom_call.1} parent=11 // pred_region
          _
        $region24: #{tpu_custom_call.1} parent=11 // pred_fallthru
          _
        // Predicated region
        $region25: #{tpu_custom_call.1} parent=11 // pred_check
          %p174 = pneg %p124
        $region26: #{tpu_custom_call.1} parent=11 // pred_check_branch
          %176 = sbr.rel (%p174) target = $region28
        $region27: #{tpu_custom_call.1} parent=11 // pred_region
          _
        $region28: #{tpu_custom_call.1} parent=11 // pred_fallthru
          _
      $region12: #{tpu_custom_call.1} parent=5 // pred_fallthru
        _
      %p177 = scmp.lt.s32.totalorder %s14, 2
      // Predicated region
      $region29: #{tpu_custom_call.1} parent=5 // pred_check
        %p178 = pneg %p177
      $region30: #{tpu_custom_call.1} parent=5 // pred_check_branch
        %180 = sbr.rel (%p178) target = $region32
      $region31: #{tpu_custom_call.1} parent=5 // pred_region
        // Predicated region
        $region33: #{tpu_custom_call.1} parent=31 // pred_check
          %p181 = pneg %p34
        $region34: #{tpu_custom_call.1} parent=31 // pred_check_branch
          %183 = sbr.rel (%p181) target = $region36
        $region35: #{tpu_custom_call.1} parent=31 // pred_region
          %p184 = scmp.lt.s32.totalorder %s14, 1
          %s185 = scalar_select %p184, %s14, 1
          %s186 = smul.addr %s185, 2
          %s187 = smul.addr %s186, 4
          %s188 = scalar_lea.vmem %s0, %s187
        $region36: #{tpu_custom_call.1} parent=31 // pred_fallthru
          _
      $region32: #{tpu_custom_call.1} parent=5 // pred_fallthru
        _
      %p189 = scmp.le.s32.totalorder 1, %s14
      %p190 = scmp.lt.s32.totalorder %s14, 3
      %p191 = pnand %p189, %p190
      %p192 = pneg %p191
      // Predicated region
      $region37: #{tpu_custom_call.1} parent=5 // pred_check
        _
      $region38: #{tpu_custom_call.1} parent=5 // pred_check_branch
        %194 = sbr.rel (%p191) target = $region40
      $region39: #{tpu_custom_call.1} parent=5 // pred_region
        %s195 = ssub.s32 %s14, 1
        %p196 = scmp.lt.s32.totalorder %s19, 1
        %s197 = scalar_select %p196, %s19, 1
        %s198 = smul.addr %s197, 2
        %s199 = smul.addr %s198, 4
        %s200 = scalar_lea.vmem %s0, %s199
        %p201 = pneg %p40
        %p202 = pneg %p37
        %p203 = pneg %p61
        %p204 = pneg %p58
        %p205 = pneg %p82
        %p206 = pneg %p79
        %p207 = pneg %p103
        %p208 = pneg %p100
        %p209 = pneg %p124
        %p210 = pneg %p121
        %p211 = pneg %p150
        %p212 = pneg %p147
        %s213 = sand.u32 %s137, 1
        %s214 = scalar_lea.sflag [#allocation3], %s213
        %s215 = sand.u32 %s137, 1
        %s216 = smul.addr %s215, 8
        %s217 = scalar_lea.vmem [#allocation2], %s216
        %p218 = scmp.lt.s32.totalorder %s19, 1
        %s219 = scalar_select %p218, %s19, 1
        %s220 = smul.addr %s219, 2
        %s221 = smul.addr %s220, 4
        %s222 = scalar_lea.vmem %s0, %s221
        %v223 = vld [vmem:[%s222] sm:$0xff]
        %225 = vst [vmem:[#allocation1] ss:$2 sm:$0xff] %v223
        %v226 = vld.sshfl [vmem:[#allocation1] sm:$0xff pattern:$0x75316420]
        %v227 = vld.sshfl [vmem:[#allocation1 + $0x8] sm:$0xff pattern:$0x75316420]
        %vm230 = vcmask 1043456
        %v231 = vsel %vm230, %v226, 0.0
        %v232 = vsel %vm230, %v227, 0.0
        %v233 = vadd.f32 %v231, %v232
        %234 = vadd.xlane.f32.xlu0 %v233
        %v235 = vpop.xlane.xlu0 %234
        %v236 = vmul.f32 %v235, 0.00390625
        %v237 = vld [vmem:[%s1] sm:$0xf]
        %v238 = vld [vmem:[%s2] sm:$0x1]
        %v240 = vlaneseq
        %v241 = vand.u32 %v240, 127
        %v242 = vperm.slane %v236, %v241
        %vm243 = vcmask 31744
        %v244 = vsel %vm243, %v242, 0
        %v247 = vsel %vm230, %v237, 0
        %249 = vmatpush.msra.mxu0 0.0
        %250 = vmatpush.msra.mxu0 0.0
        %251 = vmatpush.msra.mxu0 0.0
        %252 = vmatpush.msra.mxu0 0.0
        %253 = vmatpush.msra.mxu0 0.0
        %254 = vmatpush.msra.mxu0 0.0
        %255 = vmatpush.msra.mxu0 0.0
        %256 = vmatpush.msra.mxu0 0.0
        %257 = vmatpush.msra.mxu0 0.0
        %258 = vmatpush.msra.mxu0 0.0
        %259 = vmatpush.msra.mxu0 0.0
        %260 = vmatpush.msra.mxu0 0.0
        %261 = vmatpush.msra.mxu0 0.0
        %262 = vmatpush.msra.mxu0 0.0
        %263 = vmatpush.msra.mxu0 0.0
        %264 = vmatpush.msra.mxu0 %v247
        %265 = vmatmul.f32.gmra.mxu0 %v244
        %v266 = vpop.f32.mrf.mxu0
        %v267 = vadd.f32 %v238, %v266
        %268 = vdwg.mxu0
        %v269 = vmax.f32 %v267, 0.0
        %v270 = vld [vmem:[%s3] sm:$0xff]
        %v271 = vld [vmem:[%s3 + $0x8] sm:$0xff]
        %v272 = vld [vmem:[%s3 + $0x10] sm:$0xff]
        %v273 = vld [vmem:[%s3 + $0x18] sm:$0xff]
        %v274 = vld [vmem:[%s4] sm:$0x1]
        %vm275 = vcmask 261120
        %v277 = vsel %vm275, %v269, 0
        %279 = vmatpush.msra.mxu0 0.0
        %280 = vmatpush.msra.mxu0 0.0
        %281 = vmatpush.msra.mxu0 0.0
        %282 = vmatpush.msra.mxu0 0.0
        %283 = vmatpush.msra.mxu0 0.0
        %284 = vmatpush.msra.mxu0 0.0
        %285 = vmatpush.msra.mxu0 0.0
        %286 = vmatpush.msra.mxu0 0.0
        %287 = vmatpush.msra.mxu0 0.0
        %288 = vmatpush.msra.mxu0 0.0
        %289 = vmatpush.msra.mxu0 0.0
        %290 = vmatpush.msra.mxu0 0.0
        %291 = vmatpush.msra.mxu0 %v273
        %292 = vmatpush.msra.mxu0 %v272
        %293 = vmatpush.msra.mxu0 %v271
        %294 = vmatpush.msra.mxu0 %v270
        %295 = vmatmul.f32.gmra.mxu0 %v277
        %v296 = vpop.f32.mrf.mxu0
        %v297 = vadd.f32 %v274, %v296
        %298 = vdwg.mxu0
        %v299 = vxor.u32 %v297, 2147483648
        %v300 = vmul.f32 %v299, 1.442695
        %v301 = vpow.pop %v300
        %v302 = vadd.f32 %v301, 1.0
        %v303 = vrcp.pop %v302
        %v304 = vmul.f32 %v302, %v303
        %v305 = vsub.f32 1.0, %v304
        %v306 = vmul.f32 %v303, %v305
        %v307 = vadd.f32 %v303, %v306
        %vm308 = vweird.f32 %v302
        %vm309 = vweird.f32 %v303
        %vm310 = vmor %vm308, %vm309
        %v311 = vsel %vm310, %v303, %v307
        %v312 = vand.u32 2147483647, %v302
        %vm313 = vcmp.eq.f32.partialorder %v312, 8.507059e+37
        %v314 = vand.u32 %v302, 2147483648
        %v315 = vor.u32 1.1754944e-38, %v314
        %v316 = vsel %vm313, %v315, %v311
        %v317 = vmul.f32 1.0, %v316
        %v318 = vperm.slane %v317, 0
        %v319 = vlaneseq
        %v320 = vshrl.u32 %v319, 7
        %322 = vset.pattern.permute.xlu0 %v320
        %323 = vperm.xlu0 %322, %v318
        %v324 = vpop.permute.xlu0 %323
        %v327 = vunpack.c.l.s4 839922192
        %v328 = vunpack.c.0.s8 %v327
        %v329 = vperm.slane %v324, %v328
        %v331 = vmul.f32 %v223, %v329
        %332 = vst [vmem:[%s217] sm:$0xff] %v331
        %s333 = sand.u32 %s137, 1
        %s334 = scalar_lea.sflag [#allocation3], %s333
        %s335 = sand.u32 %s137, 1
        %s336 = smul.addr %s335, 8
        %s337 = scalar_lea.vmem [#allocation2], %s336
        // Predicated region
        $region41: #{tpu_custom_call.1} parent=39 // pred_check
          %p338 = pneg %p147
        $region42: #{tpu_custom_call.1} parent=39 // pred_check_branch
          %340 = sbr.rel (%p338) target = $region44
        $region43: #{tpu_custom_call.1} parent=39 // pred_region
          %342 = vsyncadd %s334, 0
          %s343 = smul.addr %s19, 2
          %s344 = smul.addr %s343, 4
          %s345 = scalar_lea.hbm %s5, %s344
          %s347 = sshll.u32 %s337, 4
          %s348 = int_to_ptr.vmem [resolvable:$true] %s347
          %s349 = sshll.u32 %s345, 4
          %s350 = int_to_ptr.hbm [resolvable:$true] %s349
          %352 = dma.vmem_to_hbm [thread:$0]  %s348, 128, %s350, %s334
        $region44: #{tpu_custom_call.1} parent=39 // pred_fallthru
          _
      $region40: #{tpu_custom_call.1} parent=5 // pred_fallthru
        _
      %p353 = scmp.le.s32.totalorder 2, %s14
      // Predicated region
      $region45: #{tpu_custom_call.1} parent=5 // pred_check
        %p354 = pneg %p353
      $region46: #{tpu_custom_call.1} parent=5 // pred_check_branch
        %356 = sbr.rel (%p354) target = $region48
      $region47: #{tpu_custom_call.1} parent=5 // pred_region
        %s357 = ssub.s32 %s14, 2
        // Predicated region
        $region49: #{tpu_custom_call.1} parent=47 // pred_check
          %p358 = pneg %p153
        $region50: #{tpu_custom_call.1} parent=47 // pred_check_branch
          %360 = sbr.rel (%p358) target = $region52
        $region51: #{tpu_custom_call.1} parent=47 // pred_region
          %s361 = sand.u32 %s138, 1
          %s362 = scalar_lea.sflag [#allocation3], %s361
          %s363 = sand.u32 %s138, 1
          %s364 = smul.addr %s363, 8
          %s365 = scalar_lea.vmem [#allocation2], %s364
          %367 = dma.done %s362, 128
        $region52: #{tpu_custom_call.1} parent=47 // pred_fallthru
          _
      $region48: #{tpu_custom_call.1} parent=5 // pred_fallthru
        _
    $region6: #{tpu_custom_call.1} parent=1 // loop_footer
      %s18 = sadd.s32 1, %s14
    $region7: #{tpu_custom_call.1} parent=1 // loop_footer_branch
      %13 = sbr.rel target = $region3
    $region8: #{tpu_custom_call.1} parent=1 // loop_exit
      _
    %368 = vsyncpa [#allocation3], 1
    %s369 = scalar_lea.sflag [#allocation3], 1
    %370 = vsyncpa %s369, 1

</llo_original>
